<compile_context>
chip_gen: v6e
topology: v6e:2x2x1
jax: 0.10.0
libtpu: 0.0.40
codegen_flags: <defaults>
</compile_context>

<pallas_src>
import functools

import jax
import jax.numpy as jnp
from jax import lax
from jax.experimental import pallas as pl
from jax.experimental.pallas import tpu as pltpu


# ---------------------------------------------------------------------------
# Kernel 1: stacked MLP (linear + relu/tanh) followed by row-wise L2 norm.
# ---------------------------------------------------------------------------
def _mlp_norm_kernel(x_ref, w_ref, b_ref, out_ref, *, nlayers, act):
    h = x_ref[...].astype(jnp.float32)                          # (TM, D)
    for l in range(nlayers):
        w = w_ref[l]                                             # (D_in, D_out) pre-transposed
        b = b_ref[l]                                             # (1, D_out)
        h = jnp.dot(h, w, preferred_element_type=jnp.float32) + b
        if l != nlayers - 1:
            if act == "relu":
                h = jnp.maximum(h, 0.0)
            elif act == "tanh":
                h = jnp.tanh(h)
    # F.normalize(h, dim=1, p=2): h / max(||h||, 1e-12) == h * rsqrt(max(sumsq, 1e-24))
    sumsq = jnp.sum(h * h, axis=-1, keepdims=True)
    h = h * lax.rsqrt(jnp.maximum(sumsq, 1e-24))
    out_ref[...] = h.astype(out_ref.dtype)


# ---------------------------------------------------------------------------
# Kernel 2a (fused path, small N): sims + top-(k+1) mask + relu in one pass.
# The (k+1)-th distinct value is found by recomputing the masked max from the
# immutable sims each iteration — only a (TM, 1) threshold is carried.
# ---------------------------------------------------------------------------
def _sim_topk_fused_kernel(e_tile_ref, e_t_ref, out_ref, *, kplus1, n_valid, mask_cols):
    sims = jnp.dot(e_tile_ref[...], e_t_ref[...],
                   preferred_element_type=jnp.float32)           # (TM, Np) f32
    if mask_cols:
        col = lax.broadcasted_iota(jnp.int32, sims.shape, 1)
        cand = jnp.where(col < n_valid, sims, -jnp.inf)          # exclude padded columns
    else:
        cand = sims
    thresh = jnp.full((sims.shape[0], 1), jnp.inf, dtype=jnp.float32)
    for _ in range(kplus1):                                      # k+1 is tiny -> unrolled
        thresh = jnp.max(jnp.where(cand >= thresh, -jnp.inf, cand),
                         axis=-1, keepdims=True)
    keep = (sims >= thresh) & (sims > 0.0)                       # top-(k+1) mask + relu
    out_ref[...] = jnp.where(keep, sims, 0.0).astype(out_ref.dtype)


# ---------------------------------------------------------------------------
# Kernel 2b (streaming path, pass 1): per-row running distinct-top-(k+1) over
# column blocks; writes the (k+1)-th largest value per row at the last block.
# ---------------------------------------------------------------------------
def _sim_thresh_kernel(e_tile_ref, e_t_col_ref, thresh_ref, topv_ref,
                       *, kplus1, tnb, n_valid, mask_cols):
    j = pl.program_id(1)

    @pl.when(j == 0)
    def _():
        topv_ref[...] = jnp.full_like(topv_ref, -jnp.inf)

    sims = jnp.dot(e_tile_ref[...], e_t_col_ref[...],
                   preferred_element_type=jnp.float32)           # (TM, TNB) f32
    if mask_cols:
        col = lax.broadcasted_iota(jnp.int32, sims.shape, 1) + j * tnb
        sims = jnp.where(col < n_valid, sims, -jnp.inf)          # exclude padded columns

    topv = topv_ref[...]                                         # (TM, K+1) running top values
    prev = jnp.full((sims.shape[0], 1), jnp.inf, dtype=jnp.float32)
    vals = []
    for _ in range(kplus1):
        nxt_blk = jnp.max(jnp.where(sims >= prev, -jnp.inf, sims),
                          axis=-1, keepdims=True)
        nxt_top = jnp.max(jnp.where(topv >= prev, -jnp.inf, topv),
                          axis=-1, keepdims=True)
        prev = jnp.maximum(nxt_blk, nxt_top)                     # next distinct value of union
        vals.append(prev)
    topv_ref[...] = jnp.concatenate(vals, axis=-1)

    @pl.when(j == pl.num_programs(1) - 1)
    def _():
        thresh_ref[...] = prev                                   # (k+1)-th distinct value


# ---------------------------------------------------------------------------
# Kernel 2c (streaming path, pass 2): re-run the cheap D-dim matmul, apply the
# precomputed threshold, relu, and store one lane-dense (TM, TNB) output block.
# ---------------------------------------------------------------------------
def _sim_apply_kernel(e_tile_ref, e_t_col_ref, thresh_ref, out_ref):
    sims = jnp.dot(e_tile_ref[...], e_t_col_ref[...],
                   preferred_element_type=jnp.float32)           # (TM, TNB) f32
    keep = (sims >= thresh_ref[...]) & (sims > 0.0)
    out_ref[...] = jnp.where(keep, sims, 0.0).astype(out_ref.dtype)


# ---------------------------------------------------------------------------
# Tiling / VMEM-budget helpers
# ---------------------------------------------------------------------------
def _round_up(x, m):
    return ((x + m - 1) // m) * m


def _pick_tile(total, want, quantum):
    """Largest multiple of `quantum` <= want that divides total (total is a multiple of quantum)."""
    t = min(want, total)
    t = max(quantum, (t // quantum) * quantum)
    while t > quantum and total % t != 0:
        t -= quantum
    return t


def _stage1_need(tm, d, nlayers, eb):
    return (2 * tm * d * 4 + 2 * tm * d * eb
            + 2 * nlayers * d * d * 4 + 2 * nlayers * d * 4
            + 4 * tm * d * 4)


def _fused_need(tm, npad, d, eb, ob):
    return (2 * tm * d * eb + 2 * d * npad * eb
            + 2 * tm * npad * ob + 2 * tm * npad * 4 + 4 * tm * 4)


def _stream_need(tm, tnb, d, eb, ob, kp1):
    return (2 * tm * d * eb + 2 * d * tnb * eb
            + 2 * tm * tnb * ob + 2 * tm * tnb * 4
            + tm * kp1 * 4 + 8 * tm * 4)


def _vmem_limit_bytes(need, cap):
    """Raise the scoped-VMEM limit only when needed; never clamp it below the working set."""
    if need <= (12 << 20):
        return None
    return int(min(cap - (8 << 20), max(2 * need, 32 << 20)))


# ---------------------------------------------------------------------------
# Wrapper
# ---------------------------------------------------------------------------
def mlp_learner_forward(features, weights, biases, k, act="relu",
                        embed_dtype=jnp.bfloat16, out_dtype=jnp.float32,
                        force_col_block=None):
    """features: (N, D) f32. weights: (L, D, D) torch (out,in) layout. biases: (L, 1, D)."""
    n, d = features.shape
    nlayers = int(weights.shape[0])
    kp1 = int(k) + 1
    eb = jnp.dtype(embed_dtype).itemsize
    ob = jnp.dtype(out_dtype).itemsize

    # Generation-aware VMEM budget (v5e/v6e: 128 MiB physical, v7x: 64 MiB per TC).
    try:
        cap = int(pltpu.get_tpu_info().vmem_capacity_bytes)
    except Exception:  # conservative fallback: v7x per-TensorCore VMEM
        cap = 64 << 20
    budget = min(int(cap * 0.55), 96 << 20)
    want_rows = 512 if budget >= (48 << 20) else 256

    # Torch nn.Linear stores (out, in); pre-transpose ONCE so the MXU sees the
    # contracting dim leading on the RHS of every matmul (no per-step relayout).
    w_t = jnp.swapaxes(weights, 1, 2)                             # (L, D_in, D_out)

    # ---- decide stage-2 structure: fused full-row tile vs. column streaming ----
    n_pad8 = _round_up(n, 8)
    tm_fused = _pick_tile(n_pad8, want_rows, 8)
    while tm_fused > 8 and _fused_need(tm_fused, n_pad8, d, eb, ob) > budget:
        tm_fused = _pick_tile(n_pad8, tm_fused // 2, 8)
    use_fused = (force_col_block is None
                 and _fused_need(tm_fused, n_pad8, d, eb, ob) <= budget)

    if use_fused:
        np_ = n_pad8
        tm2 = tm_fused
        tnb = np_
    else:
        np_ = _round_up(n, 128)
        tm2 = _pick_tile(np_, want_rows, 8)
        if force_col_block is not None:
            tnb = _pick_tile(np_, int(force_col_block), 128)
        else:
            tnb = 128
            for cand in (2048, 1024, 512, 256, 128):
                if cand <= np_ and np_ % cand == 0 and \
                        _stream_need(tm2, cand, d, eb, ob, kp1) <= budget:
                    tnb = cand
                    break
        while tm2 > 8 and _stream_need(tm2, tnb, d, eb, ob, kp1) > budget:
            tm2 = _pick_tile(np_, tm2 // 2, 8)

    # ---- pad node rows so every tile divides the padded extent ----
    if np_ != n:
        features = jnp.pad(features, ((0, np_ - n), (0, 0)))

    # ---- stage 1: MLP + row-wise L2 normalization (row-tiled, weights resident) ----
    tm1 = _pick_tile(np_, want_rows, 8)
    while tm1 > 8 and _stage1_need(tm1, d, nlayers, eb) > budget:
        tm1 = _pick_tile(np_, tm1 // 2, 8)
    embeddings = pl.pallas_call(
        functools.partial(_mlp_norm_kernel, nlayers=nlayers, act=act),
        out_shape=jax.ShapeDtypeStruct((np_, d), embed_dtype),
        grid_spec=pltpu.PrefetchScalarGridSpec(
            num_scalar_prefetch=0,
            grid=(np_ // tm1,),
            in_specs=[
                pl.BlockSpec((tm1, d), lambda i: (i, 0)),
                pl.BlockSpec((nlayers, d, d), lambda i: (0, 0, 0)),
                pl.BlockSpec((nlayers, 1, d), lambda i: (0, 0, 0)),
            ],
            out_specs=pl.BlockSpec((tm1, d), lambda i: (i, 0)),
        ),
        compiler_params=pltpu.CompilerParams(
            dimension_semantics=("parallel",),
            vmem_limit_bytes=_vmem_limit_bytes(_stage1_need(tm1, d, nlayers, eb), cap)),
    )(features, w_t, biases)

    # Transpose ONCE in the wrapper: the similarity matmul's RHS gets its contracting
    # (feature) dim leading, so the resident/streamed block never needs an XLU relayout.
    emb_t = embeddings.T                                          # (D, Np)

    if use_fused:
        need = _fused_need(tm2, np_, d, eb, ob)
        sims = pl.pallas_call(
            functools.partial(_sim_topk_fused_kernel, kplus1=kp1,
                              n_valid=n, mask_cols=(np_ != n)),
            out_shape=jax.ShapeDtypeStruct((np_, np_), out_dtype),
            grid_spec=pltpu.PrefetchScalarGridSpec(
                num_scalar_prefetch=0,
                grid=(np_ // tm2,),
                in_specs=[
                    pl.BlockSpec((tm2, d), lambda i: (i, 0)),
                    pl.BlockSpec((d, np_), lambda i: (0, 0)),
                ],
                out_specs=pl.BlockSpec((tm2, np_), lambda i: (i, 0)),
            ),
            compiler_params=pltpu.CompilerParams(
                dimension_semantics=("parallel",),
                vmem_limit_bytes=_vmem_limit_bytes(need, cap)),
        )(embeddings, emb_t)
    else:
        need = _stream_need(tm2, tnb, d, eb, ob, kp1)
        limit = _vmem_limit_bytes(need, cap)
        grid = (np_ // tm2, np_ // tnb)
        # Pass 1: streamed per-row distinct-top-(k+1) threshold (column axis "arbitrary").
        thresh = pl.pallas_call(
            functools.partial(_sim_thresh_kernel, kplus1=kp1, tnb=tnb,
                              n_valid=n, mask_cols=(np_ != n)),
            out_shape=jax.ShapeDtypeStruct((np_, 1), jnp.float32),
            grid_spec=pltpu.PrefetchScalarGridSpec(
                num_scalar_prefetch=0,
                grid=grid,
                in_specs=[
                    pl.BlockSpec((tm2, d), lambda i, j: (i, 0)),
                    pl.BlockSpec((d, tnb), lambda i, j: (0, j)),
                ],
                out_specs=pl.BlockSpec((tm2, 1), lambda i, j: (i, 0)),
                scratch_shapes=[pltpu.VMEM((tm2, kp1), jnp.float32)],
            ),
            compiler_params=pltpu.CompilerParams(
                dimension_semantics=("parallel", "arbitrary"),
                vmem_limit_bytes=limit),
        )(embeddings, emb_t)
        # Pass 2: recompute the cheap D-dim matmul, mask + relu + lane-dense store.
        sims = pl.pallas_call(
            _sim_apply_kernel,
            out_shape=jax.ShapeDtypeStruct((np_, np_), out_dtype),
            grid_spec=pltpu.PrefetchScalarGridSpec(
                num_scalar_prefetch=0,
                grid=grid,
                in_specs=[
                    pl.BlockSpec((tm2, d), lambda i, j: (i, 0)),
                    pl.BlockSpec((d, tnb), lambda i, j: (0, j)),
                    pl.BlockSpec((tm2, 1), lambda i, j: (i, 0)),
                ],
                out_specs=pl.BlockSpec((tm2, tnb), lambda i, j: (i, j)),
            ),
            compiler_params=pltpu.CompilerParams(
                dimension_semantics=("parallel", "parallel"),
                vmem_limit_bytes=limit),
        )(embeddings, emb_t, thresh)

    if np_ != n:
        sims = sims[:n, :n]
    return sims


# ---------------------------------------------------------------------------
# Pure-JAX reference (for correctness check)
# ---------------------------------------------------------------------------
def _ref_forward(features, weights, biases, k, act="relu"):
    h = features
    nlayers = weights.shape[0]
    for l in range(nlayers):
        h = h @ weights[l].T + biases[l, 0]
        if l != nlayers - 1:
            h = jnp.maximum(h, 0.0) if act == "relu" else jnp.tanh(h)
    norm = jnp.sqrt(jnp.sum(h * h, axis=1, keepdims=True))
    h = h / jnp.maximum(norm, 1e-12)
    sims = h @ h.T
    _, inds = lax.top_k(sims, k + 1)
    mask = jnp.zeros_like(sims).at[jnp.arange(sims.shape[0])[:, None], inds].set(1.0)
    return jnp.maximum(sims * mask, 0.0)


if __name__ == "__main__":
    # Module hyper-params: nlayers=2, isize=32, k=4, i=6, sparse=False, act='relu'
    D, NLAYERS, K = 32, 2, 4

    key = jax.random.PRNGKey(0)
    k_feat, k_bias = jax.random.split(key)

    # param_init(): weight = eye(isize); bias keeps nn.Linear default U(-1/sqrt(D), 1/sqrt(D))
    weights = jnp.broadcast_to(jnp.eye(D, dtype=jnp.float32), (NLAYERS, D, D))
    bound = 1.0 / jnp.sqrt(jnp.float32(D))
    biases = jax.random.uniform(k_bias, (NLAYERS, 1, D), jnp.float32, -bound, bound)

    # --- Test 1: module-sized problem (N=16), fused stage-2 path, f32 (tight check) ---
    N1 = 16
    feats1 = jax.random.normal(k_feat, (N1, D), dtype=jnp.float32)
    out1 = jax.block_until_ready(
        mlp_learner_forward(feats1, weights, biases, K, act="relu",
                            embed_dtype=jnp.float32))
    ref1 = _ref_forward(feats1, weights, biases, K, act="relu")
    assert out1.shape == (N1, N1)
    assert jnp.allclose(out1, ref1, atol=5e-5, rtol=5e-5), "fused path mismatch vs reference"

    # --- Test 1b: default bf16 similarity-MXU operands (structural smoke check only;
    #     near-threshold selections can legitimately differ from the f32 reference) ---
    out1b = jax.block_until_ready(mlp_learner_forward(feats1, weights, biases, K, act="relu"))
    assert out1b.shape == (N1, N1)
    assert jnp.allclose(jnp.diagonal(out1b), 1.0, atol=3e-2)

    # --- Test 2: larger N with the column-streaming stage-2 path forced (tnb=128) ---
    N2 = 256
    feats2 = jax.random.normal(jax.random.fold_in(key, 2), (N2, D), dtype=jnp.float32)
    out2 = jax.block_until_ready(
        mlp_learner_forward(feats2, weights, biases, K, act="relu",
                            embed_dtype=jnp.float32, force_col_block=128))
    ref2 = _ref_forward(feats2, weights, biases, K, act="relu")
    assert out2.shape == (N2, N2)
    diff = jnp.abs(out2 - ref2)
    # Allow a handful of entries to differ (value-threshold selection vs. index-based
    # lax.top_k can flip on numerically near-tied (k+1)/(k+2)-th similarities).
    n_bad = int(jnp.sum(diff > 1e-4))
    assert n_bad <= 4, f"streaming path mismatch vs reference: {n_bad} entries differ"

    print("KERNEL_OK")
</pallas_src>

<mosaic_0001>
module attributes {stable_mosaic.version = 11 : i64} {
  func.func @_mlp_norm_kernel(%arg0: i32, %arg1: memref<16x32xf32, #tpu.memory_space<vmem>>, %arg2: memref<2x32x32xf32, #tpu.memory_space<vmem>>, %arg3: memref<2x1x32xf32, #tpu.memory_space<vmem>>, %arg4: memref<16x32xf32, #tpu.memory_space<vmem>>) attributes {dimension_semantics = [#tpu.dimension_semantics<parallel>], iteration_bounds = array<i64: 1>, scalar_prefetch = 0 : i64, scratch_operands = 0 : i64, tpu.core_type = #tpu.core_type<tc>, window_params = [{transform_indices = @transform_0, window_bounds = array<i64: 16, 32>}, {pipeline_mode = #tpu.pipeline_mode<synchronous>, transform_indices = @transform_1, window_bounds = array<i64: 2, 32, 32>}, {pipeline_mode = #tpu.pipeline_mode<synchronous>, transform_indices = @transform_2, window_bounds = array<i64: 2, 1, 32>}, {transform_indices = @transform_3, window_bounds = array<i64: 16, 32>}]} {
    %c0 = arith.constant 0 : index
    %c0_0 = arith.constant 0 : index
    %0 = vector.load %arg1[%c0, %c0_0] : memref<16x32xf32, #tpu.memory_space<vmem>>, vector<16x32xf32>
    %c0_1 = arith.constant 0 : index
    %c0_2 = arith.constant 0 : index
    %c0_3 = arith.constant 0 : index
    %1 = vector.load %arg2[%c0_1, %c0_2, %c0_3] : memref<2x32x32xf32, #tpu.memory_space<vmem>>, vector<1x32x32xf32>
    %2 = vector.shape_cast %1 : vector<1x32x32xf32> to vector<32x32xf32>
    %c0_4 = arith.constant 0 : index
    %c0_5 = arith.constant 0 : index
    %c0_6 = arith.constant 0 : index
    %3 = vector.load %arg3[%c0_4, %c0_5, %c0_6] : memref<2x1x32xf32, #tpu.memory_space<vmem>>, vector<1x1x32xf32>
    %4 = vector.shape_cast %3 : vector<1x1x32xf32> to vector<1x32xf32>
    %cst = arith.constant dense<0.000000e+00> : vector<16x32xf32>
    %5 = tpu.matmul %0, %2, %cst {dimension_numbers = #tpu.dot_dimension_numbers<[1], [0], [0], [1], [0, 0, 1, 1], [], []>} : vector<16x32xf32>, vector<32x32xf32>, vector<16x32xf32> -> vector<16x32xf32>
    %6 = vector.broadcast %4 : vector<1x32xf32> to vector<16x32xf32>
    %7 = arith.addf %5, %6 : vector<16x32xf32>
    %cst_7 = arith.constant 0.000000e+00 : f32
    %8 = vector.broadcast %cst_7 : f32 to vector<16x32xf32>
    %9 = arith.maximumf %7, %8 : vector<16x32xf32>
    %c1 = arith.constant 1 : index
    %c0_8 = arith.constant 0 : index
    %c0_9 = arith.constant 0 : index
    %10 = vector.load %arg2[%c1, %c0_8, %c0_9] : memref<2x32x32xf32, #tpu.memory_space<vmem>>, vector<1x32x32xf32>
    %11 = vector.shape_cast %10 : vector<1x32x32xf32> to vector<32x32xf32>
    %c1_10 = arith.constant 1 : index
    %c0_11 = arith.constant 0 : index
    %c0_12 = arith.constant 0 : index
    %12 = vector.load %arg3[%c1_10, %c0_11, %c0_12] : memref<2x1x32xf32, #tpu.memory_space<vmem>>, vector<1x1x32xf32>
    %13 = vector.shape_cast %12 : vector<1x1x32xf32> to vector<1x32xf32>
    %cst_13 = arith.constant dense<0.000000e+00> : vector<16x32xf32>
    %14 = tpu.matmul %9, %11, %cst_13 {dimension_numbers = #tpu.dot_dimension_numbers<[1], [0], [0], [1], [0, 0, 1, 1], [], []>} : vector<16x32xf32>, vector<32x32xf32>, vector<16x32xf32> -> vector<16x32xf32>
    %15 = vector.broadcast %13 : vector<1x32xf32> to vector<16x32xf32>
    %16 = arith.addf %14, %15 : vector<16x32xf32>
    %17 = arith.mulf %16, %16 : vector<16x32xf32>
    %cst_14 = arith.constant dense<0.000000e+00> : vector<16xf32>
    %18 = vector.multi_reduction <add>, %17, %cst_14 [1] : vector<16x32xf32> to vector<16xf32>
    %19 = vector.shape_cast %18 : vector<16xf32> to vector<16x1xf32>
    %cst_15 = arith.constant 1.000000e-24 : f32
    %20 = vector.broadcast %cst_15 : f32 to vector<16x1xf32>
    %21 = arith.maximumf %19, %20 : vector<16x1xf32>
    %22 = math.rsqrt %21 : vector<16x1xf32>
    %23 = vector.broadcast %22 : vector<16x1xf32> to vector<16x32xf32>
    %24 = arith.mulf %16, %23 : vector<16x32xf32>
    %c0_16 = arith.constant 0 : index
    %c0_17 = arith.constant 0 : index
    %25 = vector.load %arg4[%c0_16, %c0_17] : memref<16x32xf32, #tpu.memory_space<vmem>>, vector<16x32xf32>
    tpu.vector_store %arg4[%c0_16, %c0_17], %24 {strides = array<i32>} : memref<16x32xf32, #tpu.memory_space<vmem>>, vector<16x32xf32>,
    return
  }
  func.func @transform_0(%arg0: i32) -> (i32, i32) {
    %c0_i32 = arith.constant 0 : i32
    %c0_i32_0 = arith.constant 0 : i32
    return %arg0, %c0_i32 : i32, i32
  }
  func.func @transform_1(%arg0: i32) -> (i32, i32, i32) {
    %c0_i32 = arith.constant 0 : i32
    %c0_i32_0 = arith.constant 0 : i32
    %c0_i32_1 = arith.constant 0 : i32
    %c0_i32_2 = arith.constant 0 : i32
    return %c0_i32, %c0_i32_0, %c0_i32_1 : i32, i32, i32
  }
  func.func @transform_2(%arg0: i32) -> (i32, i32, i32) {
    %c0_i32 = arith.constant 0 : i32
    %c0_i32_0 = arith.constant 0 : i32
    %c0_i32_1 = arith.constant 0 : i32
    %c0_i32_2 = arith.constant 0 : i32
    return %c0_i32, %c0_i32_0, %c0_i32_1 : i32, i32, i32
  }
  func.func @transform_3(%arg0: i32) -> (i32, i32) {
    %c0_i32 = arith.constant 0 : i32
    %c0_i32_0 = arith.constant 0 : i32
    return %arg0, %c0_i32 : i32, i32
  }
}

</mosaic_0001>

<llo_original>
// kernel: tpu_custom_call.1
$region0: #{tpu_custom_call.1}
  #allocation0 [shape = 'u32[]', space=smem, size = 0x4, offset = 0x4, fixed_abs, tag = 'smem constant byte address 0x4 - core index']
  #allocation1 [shape = 'u32[144,128]{1,0:T(1,128)}', space=vmem, size = 0x12000, scoped, tag = 'internal scratch']
  %s0 = inlined_call_operand.hbm [shape: f32[16,32], index: 0, kind: input, shape index: {}]
  %s1 = inlined_call_operand.hbm [shape: f32[2,32,32], index: 1, kind: input, shape index: {}]
  %s2 = inlined_call_operand.vmem [shape: f32[2,1,32], index: 2, kind: input, shape index: {}]
  %s3 = inlined_call_operand.hbm [shape: f32[16,32], index: 3, kind: output, shape index: {}]
  %s4 = sld [smem:[#allocation0]]
  $region30: #{tpu_custom_call.1} parent=0
    _
  %s6 = ssub.s32 1, %s4
  %s7 = scalar_select 0, %s6, %s4
  $region1: #{tpu_custom_call.1} parent=0
    #allocation2 [shape = 'u8[8192]{0}', space=vmem, size = 0x2000, scoped, tag = 'input window, operand 0, single buffered']
    #allocation3 [shape = 's32[1]{0}', space=sflag, size = 0x4, scoped, tag = 'scoped memory for tpu_custom_call.1']
    #allocation4 [shape = 's32[1]{0}', space=sflag, size = 0x4, scoped, tag = 'scoped memory for tpu_custom_call.1']
    #allocation5 [shape = 'u8[32768]{0}', space=vmem, size = 0x8000, scoped, tag = 'input window, operand 1, single buffered']
    #allocation6 [shape = 's32[1]{0}', space=sflag, size = 0x4, scoped, tag = 'scoped memory for tpu_custom_call.1']
    #allocation7 [shape = 'u8[8192]{0}', space=vmem, size = 0x2000, scoped, tag = 'output window, operand 0, single buffered']
    %8 = vsyncpa [#allocation3], 0
    %9 = vsyncpa [#allocation6], 0
    %10 = vsyncpa [#allocation4], 0
    // Predicated region
    $region2: #{tpu_custom_call.1} parent=1 // pred_check
      _
    $region3: #{tpu_custom_call.1} parent=1 // pred_check_branch
      %12 = sbr.rel (0) target = $region5
    $region4: #{tpu_custom_call.1} parent=1 // pred_region
      %s14 = ssub.s32 256, 256
      %15 = vsyncadd [#allocation3], %s14
      %s16 = sshll.u32 [#allocation2], 4
      %s17 = int_to_ptr.vmem [resolvable:$true] %s16
      %22 = dma.hbm_to_vmem [thread:$0]  %s0, 256, %s17, [#allocation3], 128, 128, 8
    $region5: #{tpu_custom_call.1} parent=1 // pred_fallthru
      _
    // Predicated region
    $region6: #{tpu_custom_call.1} parent=1 // pred_check
      _
    $region7: #{tpu_custom_call.1} parent=1 // pred_check_branch
      %24 = sbr.rel (0) target = $region9
    $region8: #{tpu_custom_call.1} parent=1 // pred_region
      %s26 = ssub.s32 1024, 1024
      %27 = vsyncadd [#allocation6], %s26
      %s28 = sshll.u32 [#allocation5], 4
      %s29 = int_to_ptr.vmem [resolvable:$true] %s28
      %34 = dma.hbm_to_vmem [thread:$0]  %s1, 1024, %s29, [#allocation6], 128, 128, 8
    $region9: #{tpu_custom_call.1} parent=1 // pred_fallthru
      _
    // Predicated region
    $region10: #{tpu_custom_call.1} parent=1 // pred_check
      _
    $region11: #{tpu_custom_call.1} parent=1 // pred_check_branch
      %36 = sbr.rel (0) target = $region13
    $region12: #{tpu_custom_call.1} parent=1 // pred_region
      _
    $region13: #{tpu_custom_call.1} parent=1 // pred_fallthru
      _
    // Predicated region
    $region14: #{tpu_custom_call.1} parent=1 // pred_check
      _
    $region15: #{tpu_custom_call.1} parent=1 // pred_check_branch
      %38 = sbr.rel (0) target = $region17
    $region16: #{tpu_custom_call.1} parent=1 // pred_region
      %39 = dma.done [#allocation3], 256
    $region17: #{tpu_custom_call.1} parent=1 // pred_fallthru
      _
    // Predicated region
    $region18: #{tpu_custom_call.1} parent=1 // pred_check
      _
    $region19: #{tpu_custom_call.1} parent=1 // pred_check_branch
      %41 = sbr.rel (0) target = $region21
    $region20: #{tpu_custom_call.1} parent=1 // pred_region
      %42 = dma.done [#allocation6], 1024
    $region21: #{tpu_custom_call.1} parent=1 // pred_fallthru
      _
    %v43 = vld [vmem:[#allocation2] sm:$0xff]
    %v44 = vld [vmem:[#allocation2 + $0x8] sm:$0xff]
    %v45 = vld [vmem:[#allocation5] sm:$0xff]
    %v46 = vld [vmem:[#allocation5 + $0x8] sm:$0xff]
    %v47 = vld [vmem:[#allocation5 + $0x10] sm:$0xff]
    %v48 = vld [vmem:[#allocation5 + $0x18] sm:$0xff]
    %v49 = vld [vmem:[%s2] sm:$0x1]
    %v51 = vlaneseq
    %v52 = vshrl.u32 %v51, 7
    %v53 = vsub.s32 0, %v52
    %v54 = vrot.slane %v49, %v53
    %vm56 = vcmask 261120
    %v58 = vsel %vm56, %v43, 0
    %v61 = vsel %vm56, %v44, 0
    %63 = vmatprep.subr.mxu0 0.0
    %64 = vmatpush1.msra.mxu0 0.0
    %65 = vmatprep.subr.mxu0 0.0
    %66 = vmatpush1.msra.mxu0 0.0
    %67 = vmatprep.subr.mxu0 0.0
    %68 = vmatpush1.msra.mxu0 0.0
    %69 = vmatprep.subr.mxu0 0.0
    %70 = vmatpush1.msra.mxu0 0.0
    %71 = vmatprep.subr.mxu0 0.0
    %72 = vmatpush1.msra.mxu0 0.0
    %73 = vmatprep.subr.mxu0 0.0
    %74 = vmatpush1.msra.mxu0 0.0
    %75 = vmatprep.subr.mxu0 0.0
    %76 = vmatpush1.msra.mxu0 0.0
    %77 = vmatprep.subr.mxu0 0.0
    %78 = vmatpush1.msra.mxu0 0.0
    %79 = vmatprep.subr.mxu0 0.0
    %80 = vmatpush1.msra.mxu0 0.0
    %81 = vmatprep.subr.mxu0 0.0
    %82 = vmatpush1.msra.mxu0 0.0
    %83 = vmatprep.subr.mxu0 0.0
    %84 = vmatpush1.msra.mxu0 0.0
    %85 = vmatprep.subr.mxu0 0.0
    %86 = vmatpush1.msra.mxu0 0.0
    %87 = vmatprep.subr.mxu0 0.0
    %88 = vmatpush1.msra.mxu0 %v48
    %89 = vmatprep.subr.mxu0 0.0
    %90 = vmatpush1.msra.mxu0 %v47
    %91 = vmatprep.subr.mxu0 0.0
    %92 = vmatpush1.msra.mxu0 %v46
    %93 = vmatprep.subr.mxu0 0.0
    %94 = vmatpush1.msra.mxu0 %v45
    %95 = vmatprep.subr.mxu0 0.0
    %96 = vmatpush2.msra.mxu0 0.0
    %97 = vmatprep.subr.mxu0 0.0
    %98 = vmatpush2.msra.mxu0 0.0
    %99 = vmatprep.subr.mxu0 0.0
    %100 = vmatpush2.msra.mxu0 0.0
    %101 = vmatprep.subr.mxu0 0.0
    %102 = vmatpush2.msra.mxu0 0.0
    %103 = vmatprep.subr.mxu0 0.0
    %104 = vmatpush2.msra.mxu0 0.0
    %105 = vmatprep.subr.mxu0 0.0
    %106 = vmatpush2.msra.mxu0 0.0
    %107 = vmatprep.subr.mxu0 0.0
    %108 = vmatpush2.msra.mxu0 0.0
    %109 = vmatprep.subr.mxu0 0.0
    %110 = vmatpush2.msra.mxu0 0.0
    %111 = vmatprep.subr.mxu0 0.0
    %112 = vmatpush2.msra.mxu0 0.0
    %113 = vmatprep.subr.mxu0 0.0
    %114 = vmatpush2.msra.mxu0 0.0
    %115 = vmatprep.subr.mxu0 0.0
    %116 = vmatpush2.msra.mxu0 0.0
    %117 = vmatprep.subr.mxu0 0.0
    %118 = vmatpush2.msra.mxu0 0.0
    %119 = vmatprep.subr.mxu0 0.0
    %120 = vmatpush2.msra.mxu0 0.0
    %121 = vmatprep.subr.mxu0 0.0
    %122 = vmatpush2.msra.mxu0 0.0
    %123 = vmatprep.subr.mxu0 0.0
    %124 = vmatpush2.msra.mxu0 0.0
    %125 = vmatprep.subr.mxu0 0.0
    %126 = vmatpush2.msra.mxu0 0.0
    %127 = vmatprep.mubr.f32.mxu0 0.0
    %128 = vmatmul.mubr.f32.gmra.mxu0 %v58
    %v129 = vpop.f32.mrf.mxu0
    %v130 = vadd.f32 %v54, %v129
    %v131 = vpop.f32.mrf.mxu0
    %132 = vmatprep.mubr.f32.mxu0 0.0
    %133 = vmatmul.mubr.f32.gmra.mxu0 %v61
    %v134 = vpop.f32.mrf.mxu0
    %v135 = vadd.f32 %v54, %v134
    %v136 = vpop.f32.mrf.mxu0
    %137 = vdwg.mxu0
    %v138 = vmax.f32 %v130, 0.0
    %v139 = vmax.f32 %v135, 0.0
    %s140 = scalar_lea.vmem [#allocation5], 32
    %v141 = vld [vmem:[%s140] sm:$0xff]
    %v142 = vld [vmem:[%s140 + $0x8] sm:$0xff]
    %v143 = vld [vmem:[%s140 + $0x10] sm:$0xff]
    %v144 = vld [vmem:[%s140 + $0x18] sm:$0xff]
    %s145 = scalar_lea.vmem %s2, 1
    %v146 = vld [vmem:[%s145] sm:$0x1]
    %v148 = vlaneseq
    %v149 = vshrl.u32 %v148, 7
    %v150 = vsub.s32 0, %v149
    %v151 = vrot.slane %v146, %v150
    %v154 = vsel %vm56, %v138, 0
    %v157 = vsel %vm56, %v139, 0
    %159 = vmatprep.subr.mxu0 0.0
    %160 = vmatpush1.msra.mxu0 0.0
    %161 = vmatprep.subr.mxu0 0.0
    %162 = vmatpush1.msra.mxu0 0.0
    %163 = vmatprep.subr.mxu0 0.0
    %164 = vmatpush1.msra.mxu0 0.0
    %165 = vmatprep.subr.mxu0 0.0
    %166 = vmatpush1.msra.mxu0 0.0
    %167 = vmatprep.subr.mxu0 0.0
    %168 = vmatpush1.msra.mxu0 0.0
    %169 = vmatprep.subr.mxu0 0.0
    %170 = vmatpush1.msra.mxu0 0.0
    %171 = vmatprep.subr.mxu0 0.0
    %172 = vmatpush1.msra.mxu0 0.0
    %173 = vmatprep.subr.mxu0 0.0
    %174 = vmatpush1.msra.mxu0 0.0
    %175 = vmatprep.subr.mxu0 0.0
    %176 = vmatpush1.msra.mxu0 0.0
    %177 = vmatprep.subr.mxu0 0.0
    %178 = vmatpush1.msra.mxu0 0.0
    %179 = vmatprep.subr.mxu0 0.0
    %180 = vmatpush1.msra.mxu0 0.0
    %181 = vmatprep.subr.mxu0 0.0
    %182 = vmatpush1.msra.mxu0 0.0
    %183 = vmatprep.subr.mxu0 0.0
    %184 = vmatpush1.msra.mxu0 %v144
    %185 = vmatprep.subr.mxu0 0.0
    %186 = vmatpush1.msra.mxu0 %v143
    %187 = vmatprep.subr.mxu0 0.0
    %188 = vmatpush1.msra.mxu0 %v142
    %189 = vmatprep.subr.mxu0 0.0
    %190 = vmatpush1.msra.mxu0 %v141
    %191 = vmatprep.subr.mxu0 0.0
    %192 = vmatpush2.msra.mxu0 0.0
    %193 = vmatprep.subr.mxu0 0.0
    %194 = vmatpush2.msra.mxu0 0.0
    %195 = vmatprep.subr.mxu0 0.0
    %196 = vmatpush2.msra.mxu0 0.0
    %197 = vmatprep.subr.mxu0 0.0
    %198 = vmatpush2.msra.mxu0 0.0
    %199 = vmatprep.subr.mxu0 0.0
    %200 = vmatpush2.msra.mxu0 0.0
    %201 = vmatprep.subr.mxu0 0.0
    %202 = vmatpush2.msra.mxu0 0.0
    %203 = vmatprep.subr.mxu0 0.0
    %204 = vmatpush2.msra.mxu0 0.0
    %205 = vmatprep.subr.mxu0 0.0
    %206 = vmatpush2.msra.mxu0 0.0
    %207 = vmatprep.subr.mxu0 0.0
    %208 = vmatpush2.msra.mxu0 0.0
    %209 = vmatprep.subr.mxu0 0.0
    %210 = vmatpush2.msra.mxu0 0.0
    %211 = vmatprep.subr.mxu0 0.0
    %212 = vmatpush2.msra.mxu0 0.0
    %213 = vmatprep.subr.mxu0 0.0
    %214 = vmatpush2.msra.mxu0 0.0
    %215 = vmatprep.subr.mxu0 0.0
    %216 = vmatpush2.msra.mxu0 0.0
    %217 = vmatprep.subr.mxu0 0.0
    %218 = vmatpush2.msra.mxu0 0.0
    %219 = vmatprep.subr.mxu0 0.0
    %220 = vmatpush2.msra.mxu0 0.0
    %221 = vmatprep.subr.mxu0 0.0
    %222 = vmatpush2.msra.mxu0 0.0
    %223 = vmatprep.mubr.f32.mxu0 0.0
    %224 = vmatmul.mubr.f32.gmra.mxu0 %v154
    %v225 = vpop.f32.mrf.mxu0
    %v226 = vadd.f32 %v151, %v225
    %v227 = vpop.f32.mrf.mxu0
    %228 = vmatprep.mubr.f32.mxu0 0.0
    %229 = vmatmul.mubr.f32.gmra.mxu0 %v157
    %v230 = vpop.f32.mrf.mxu0
    %v231 = vadd.f32 %v151, %v230
    %v232 = vpop.f32.mrf.mxu0
    %233 = vdwg.mxu0
    %v234 = vmul.f32 %v226, %v226
    %v235 = vmul.f32 %v231, %v231
    %v236 = vsel %vm56, %v234, 0.0
    %237 = vadd.xlane.f32.xlu0 %v236
    %v238 = vpop.xlane.xlu0 %237
    %v239 = vsel %vm56, %v235, 0.0
    %240 = vadd.xlane.f32.xlu0 %v239
    %v241 = vpop.xlane.xlu0 %240
    %v242 = vmax.f32 %v238, 1e-24
    %v243 = vmax.f32 %v241, 1e-24
    %v244 = vrsqrt.pop %v242
    %v245 = vrsqrt.pop %v243
    %v246 = vmul.f32 %v226, %v244
    %v247 = vmul.f32 %v231, %v245
    %248 = vst.msk [vmem:[#allocation7] sm:$0xff] %vm56, %v246
    %249 = vst.msk [vmem:[#allocation7 + $0x8] sm:$0xff] %vm56, %v247
    // Predicated region
    $region22: #{tpu_custom_call.1} parent=1 // pred_check
      _
    $region23: #{tpu_custom_call.1} parent=1 // pred_check_branch
      %251 = sbr.rel (0) target = $region25
    $region24: #{tpu_custom_call.1} parent=1 // pred_region
      %s253 = ssub.s32 256, 256
      %254 = vsyncadd [#allocation4], %s253
      %s255 = sshll.u32 [#allocation7], 4
      %s256 = int_to_ptr.vmem [resolvable:$true] %s255
      %261 = dma.vmem_to_hbm [thread:$0]  %s256, 256, %s3, [#allocation4], 128, 128, 8
    $region25: #{tpu_custom_call.1} parent=1 // pred_fallthru
      _
    // Predicated region
    $region26: #{tpu_custom_call.1} parent=1 // pred_check
      _
    $region27: #{tpu_custom_call.1} parent=1 // pred_check_branch
      %263 = sbr.rel (0) target = $region29
    $region28: #{tpu_custom_call.1} parent=1 // pred_region
      %264 = dma.done [#allocation4], 256
    $region29: #{tpu_custom_call.1} parent=1 // pred_fallthru
      _
    %265 = vsyncpa [#allocation3], 1
    %266 = vsyncpa [#allocation6], 1
    %267 = vsyncpa [#allocation4], 1

</llo_original>
